<compile_context>
chip_gen: v5e
topology: v5e:2x2
jax: 0.10.0
libtpu: 0.0.40
codegen_flags: <defaults>
</compile_context>

<pallas_src>
import jax
import jax.numpy as jnp
from jax.experimental import pallas as pl
from jax.experimental.pallas import tpu as pltpu

_BN_EPS = 1e-5


# ------------------------------------------------------------------ kernel

def _se_fused_kernel(x_ref, w1t_ref, b1_ref, w2t_ref, b2_ref, o_ref):
    """Fused SE block for one batch tile.

    x_ref  : (BT, C, HW)  activations, spatial on the lane axis
    w1t_ref: (C, Cr)      squeeze weight, BN scale and 1/HW pre-folded, transposed
    b1_ref : (1, Cr)      folded BN shift
    w2t_ref: (Cr, C)      excite weight, BN scale pre-folded, transposed
    b2_ref : (1, C)       folded BN shift
    o_ref  : (BT, C, HW)  x * gate
    """
    x = x_ref[...]                                          # (BT, C, HW) f32

    # AdaptiveAvgPool2d(1): lane sum; the 1/HW factor is folded into w1t.
    pooled = jnp.sum(x, axis=-1)                            # (BT, C)

    # Conv2d(C, C/4, 1, bias=False) + BN + ReLU  (batched matmul on the MXU).
    hdn = jnp.dot(pooled, w1t_ref[...],
                  preferred_element_type=jnp.float32)       # (BT, Cr)
    hdn = jnp.maximum(hdn + b1_ref[...], 0.0)

    # Conv2d(C/4, C, 1, bias=False) + BN + hsigmoid.
    g = jnp.dot(hdn, w2t_ref[...],
                preferred_element_type=jnp.float32)         # (BT, C)
    g = g + b2_ref[...]
    g = jnp.clip(g + 3.0, 0.0, 6.0) * (1.0 / 6.0)           # relu6(x+3)/6

    # Gate: per-(batch, channel) scale broadcast over the spatial lanes.
    o_ref[...] = x * g[:, :, None]


# ------------------------------------------------------------------ wrapper

def _choose_batch_tile(n, c, hw, itemsize=4, target_bytes=2 * 1024 * 1024):
    """Pick B_TILE so the activation block is ~2 MiB, with >=2 grid steps."""
    per_elem = c * hw * itemsize
    bt = max(1, target_bytes // per_elem)
    bt = min(bt, n)
    if n >= 2:
        # v7x has 2 TensorCores: keep at least 2 steps on the parallel axis.
        bt = min(bt, pl.cdiv(n, 2))
    return int(max(1, bt))


def se_module_apply(x_nchw, params):
    n, c, h, w = x_nchw.shape
    hw = h * w
    cr = params["w1"].shape[0]

    # Host-side fold: BN scales (and 1/HW) into the conv weights, transpose
    # to the (in, out) orientation the batched matmuls want.
    w1t = (params["w1"] * params["bn1_s"][:, None] * (1.0 / hw)).T  # (C, Cr)
    w2t = (params["w2"] * params["bn2_s"][:, None]).T               # (Cr, C)
    b1 = params["bn1_b"].reshape(1, cr)
    b2 = params["bn2_b"].reshape(1, c)

    x3 = x_nchw.reshape(n, c, hw).astype(jnp.float32)       # free reshape (NCHW kept)

    bt = _choose_batch_tile(n, c, hw, itemsize=4)
    grid = (pl.cdiv(n, bt),)

    out = pl.pallas_call(
        _se_fused_kernel,
        out_shape=jax.ShapeDtypeStruct((n, c, hw), jnp.float32),
        grid=grid,
        in_specs=[
            pl.BlockSpec((bt, c, hw), lambda i: (i, 0, 0)),  # activation tile
            pl.BlockSpec((c, cr), lambda i: (0, 0)),         # folded w1^T
            pl.BlockSpec((1, cr), lambda i: (0, 0)),         # bn1 shift
            pl.BlockSpec((cr, c), lambda i: (0, 0)),         # folded w2^T
            pl.BlockSpec((1, c), lambda i: (0, 0)),          # bn2 shift
        ],
        out_specs=pl.BlockSpec((bt, c, hw), lambda i: (i, 0, 0)),
        compiler_params=pltpu.CompilerParams(
            # batch-tile axis is independent -> shard across TensorCores on v7x
            dimension_semantics=("parallel",),
            # in+out double-buffered ~ 4 x (bt*c*hw*4B) ~ 8 MiB; keep the limit
            # modest so it also fits v7x's 64 MiB physical VMEM with headroom.
            vmem_limit_bytes=32 * 1024 * 1024,
        ),
    )(x3, w1t.astype(jnp.float32), b1.astype(jnp.float32),
      w2t.astype(jnp.float32), b2.astype(jnp.float32))

    return out.reshape(n, c, h, w)


# ------------------------------------------------------------------ params

def _bn_fold(c):
    # gamma=1, beta=0, running_mean=0, running_var=1 -> scale / shift
    scale = jnp.full((c,), 1.0 / (1.0 + _BN_EPS) ** 0.5, jnp.float32)
    bias = jnp.zeros((c,), jnp.float32)
    return scale, bias


def init_params(in_size=64, reduction=4, seed=0):
    cr = in_size // reduction
    k1, k2 = jax.random.split(jax.random.PRNGKey(seed))
    # Conv2d weights (out, in, 1, 1) squeezed to (out, in).
    w1 = (2.0 / in_size) ** 0.5 * jax.random.normal(k1, (cr, in_size), jnp.float32)
    w2 = (2.0 / cr) ** 0.5 * jax.random.normal(k2, (in_size, cr), jnp.float32)
    p = {"w1": w1, "w2": w2}
    p["bn1_s"], p["bn1_b"] = _bn_fold(cr)
    p["bn2_s"], p["bn2_b"] = _bn_fold(in_size)
    return p


# ------------------------------------------------------------------ reference

def se_reference(x, params):
    pooled = jnp.mean(x, axis=(2, 3))                       # (N, C)
    hdn = jnp.einsum("nc,rc->nr", pooled, params["w1"],
                     precision=jax.lax.Precision.HIGHEST)
    hdn = jnp.maximum(hdn * params["bn1_s"] + params["bn1_b"], 0.0)
    g = jnp.einsum("nr,cr->nc", hdn, params["w2"],
                   precision=jax.lax.Precision.HIGHEST)
    g = g * params["bn2_s"] + params["bn2_b"]
    g = jnp.clip(g + 3.0, 0.0, 6.0) / 6.0
    return x * g[:, :, None, None]


# ------------------------------------------------------------------ main

if __name__ == "__main__":
    in_size = 64                                            # SE channel count
    params = init_params(in_size=in_size, reduction=4, seed=0)
    fwd = jax.jit(se_module_apply)

    # Small case (module-consistent shapes): batch=2, 64 ch, 16x16 spatial.
    x_small = jax.random.normal(jax.random.PRNGKey(0), (2, in_size, 16, 16),
                                jnp.float32)
    out_small = fwd(x_small, params)
    jax.block_until_ready(out_small)
    ref_small = se_reference(x_small, params)
    assert out_small.shape == x_small.shape and out_small.dtype == jnp.float32
    err_small = float(jnp.max(jnp.abs(out_small - ref_small)))
    assert jnp.allclose(out_small, ref_small, rtol=1e-4, atol=1e-4), err_small

    # Larger batch to exercise the batch-tiled grid path (B_TILE > 1).
    x_big = jax.random.normal(jax.random.PRNGKey(1), (64, in_size, 16, 16),
                              jnp.float32)
    out_big = fwd(x_big, params)
    jax.block_until_ready(out_big)
    ref_big = se_reference(x_big, params)
    err_big = float(jnp.max(jnp.abs(out_big - ref_big)))
    assert jnp.allclose(out_big, ref_big, rtol=1e-4, atol=1e-4), err_big

    print("KERNEL_OK")
</pallas_src>

<mosaic_0001>
module attributes {stable_mosaic.version = 11 : i64} {
  func.func @_se_fused_kernel(%arg0: i32, %arg1: memref<1x64x256xf32, #tpu.memory_space<vmem>>, %arg2: memref<64x16xf32, #tpu.memory_space<vmem>>, %arg3: memref<1x16xf32, #tpu.memory_space<vmem>>, %arg4: memref<16x64xf32, #tpu.memory_space<vmem>>, %arg5: memref<1x64xf32, #tpu.memory_space<vmem>>, %arg6: memref<1x64x256xf32, #tpu.memory_space<vmem>>) attributes {dimension_semantics = [#tpu.dimension_semantics<parallel>], iteration_bounds = array<i64: 2>, scalar_prefetch = 0 : i64, scratch_operands = 0 : i64, tpu.core_type = #tpu.core_type<tc>, window_params = [{transform_indices = @transform_0, window_bounds = array<i64: 1, 64, 256>}, {pipeline_mode = #tpu.pipeline_mode<synchronous>, transform_indices = @transform_1, window_bounds = array<i64: 64, 16>}, {pipeline_mode = #tpu.pipeline_mode<synchronous>, transform_indices = @transform_2, window_bounds = array<i64: 1, 16>}, {pipeline_mode = #tpu.pipeline_mode<synchronous>, transform_indices = @transform_3, window_bounds = array<i64: 16, 64>}, {pipeline_mode = #tpu.pipeline_mode<synchronous>, transform_indices = @transform_4, window_bounds = array<i64: 1, 64>}, {transform_indices = @transform_5, window_bounds = array<i64: 1, 64, 256>}]} {
    %c0 = arith.constant 0 : index
    %c0_0 = arith.constant 0 : index
    %c0_1 = arith.constant 0 : index
    %0 = vector.load %arg1[%c0, %c0_0, %c0_1] : memref<1x64x256xf32, #tpu.memory_space<vmem>>, vector<1x64x256xf32>
    %cst = arith.constant dense<0.000000e+00> : vector<1x64xf32>
    %1 = vector.multi_reduction <add>, %0, %cst [2] : vector<1x64x256xf32> to vector<1x64xf32>
    %c0_2 = arith.constant 0 : index
    %c0_3 = arith.constant 0 : index
    %2 = vector.load %arg2[%c0_2, %c0_3] : memref<64x16xf32, #tpu.memory_space<vmem>>, vector<64x16xf32>
    %cst_4 = arith.constant dense<0.000000e+00> : vector<1x16xf32>
    %3 = tpu.matmul %1, %2, %cst_4 {dimension_numbers = #tpu.dot_dimension_numbers<[1], [0], [0], [1], [0, 0, 1, 1], [], []>} : vector<1x64xf32>, vector<64x16xf32>, vector<1x16xf32> -> vector<1x16xf32>
    %c0_5 = arith.constant 0 : index
    %c0_6 = arith.constant 0 : index
    %4 = vector.load %arg3[%c0_5, %c0_6] : memref<1x16xf32, #tpu.memory_space<vmem>>, vector<1x16xf32>
    %5 = arith.addf %3, %4 : vector<1x16xf32>
    %cst_7 = arith.constant 0.000000e+00 : f32
    %6 = vector.broadcast %cst_7 : f32 to vector<1x16xf32>
    %7 = arith.maximumf %5, %6 : vector<1x16xf32>
    %c0_8 = arith.constant 0 : index
    %c0_9 = arith.constant 0 : index
    %8 = vector.load %arg4[%c0_8, %c0_9] : memref<16x64xf32, #tpu.memory_space<vmem>>, vector<16x64xf32>
    %cst_10 = arith.constant dense<0.000000e+00> : vector<1x64xf32>
    %9 = tpu.matmul %7, %8, %cst_10 {dimension_numbers = #tpu.dot_dimension_numbers<[1], [0], [0], [1], [0, 0, 1, 1], [], []>} : vector<1x16xf32>, vector<16x64xf32>, vector<1x64xf32> -> vector<1x64xf32>
    %c0_11 = arith.constant 0 : index
    %c0_12 = arith.constant 0 : index
    %10 = vector.load %arg5[%c0_11, %c0_12] : memref<1x64xf32, #tpu.memory_space<vmem>>, vector<1x64xf32>
    %11 = arith.addf %9, %10 : vector<1x64xf32>
    %cst_13 = arith.constant 3.000000e+00 : f32
    %12 = vector.broadcast %cst_13 : f32 to vector<1x64xf32>
    %13 = arith.addf %11, %12 : vector<1x64xf32>
    %cst_14 = arith.constant 0.000000e+00 : f32
    %cst_15 = arith.constant 6.000000e+00 : f32
    %14 = vector.broadcast %cst_14 : f32 to vector<1x64xf32>
    %15 = arith.maximumf %14, %13 : vector<1x64xf32>
    %16 = vector.broadcast %cst_15 : f32 to vector<1x64xf32>
    %17 = arith.minimumf %16, %15 : vector<1x64xf32>
    %cst_16 = arith.constant 0.166666672 : f32
    %18 = vector.broadcast %cst_16 : f32 to vector<1x64xf32>
    %19 = arith.mulf %17, %18 : vector<1x64xf32>
    %20 = vector.shape_cast %19 : vector<1x64xf32> to vector<1x64x1xf32>
    %21 = vector.broadcast %20 : vector<1x64x1xf32> to vector<1x64x256xf32>
    %22 = arith.mulf %0, %21 : vector<1x64x256xf32>
    %c0_17 = arith.constant 0 : index
    %c0_18 = arith.constant 0 : index
    %c0_19 = arith.constant 0 : index
    %23 = vector.load %arg6[%c0_17, %c0_18, %c0_19] : memref<1x64x256xf32, #tpu.memory_space<vmem>>, vector<1x64x256xf32>
    tpu.vector_store %arg6[%c0_17, %c0_18, %c0_19], %22 {strides = array<i32>} : memref<1x64x256xf32, #tpu.memory_space<vmem>>, vector<1x64x256xf32>,
    return
  }
  func.func @transform_0(%arg0: i32) -> (i32, i32, i32) {
    %c0_i32 = arith.constant 0 : i32
    %c0_i32_0 = arith.constant 0 : i32
    %c0_i32_1 = arith.constant 0 : i32
    return %arg0, %c0_i32, %c0_i32_0 : i32, i32, i32
  }
  func.func @transform_1(%arg0: i32) -> (i32, i32) {
    %c0_i32 = arith.constant 0 : i32
    %c0_i32_0 = arith.constant 0 : i32
    %c0_i32_1 = arith.constant 0 : i32
    return %c0_i32, %c0_i32_0 : i32, i32
  }
  func.func @transform_2(%arg0: i32) -> (i32, i32) {
    %c0_i32 = arith.constant 0 : i32
    %c0_i32_0 = arith.constant 0 : i32
    %c0_i32_1 = arith.constant 0 : i32
    return %c0_i32, %c0_i32_0 : i32, i32
  }
  func.func @transform_3(%arg0: i32) -> (i32, i32) {
    %c0_i32 = arith.constant 0 : i32
    %c0_i32_0 = arith.constant 0 : i32
    %c0_i32_1 = arith.constant 0 : i32
    return %c0_i32, %c0_i32_0 : i32, i32
  }
  func.func @transform_4(%arg0: i32) -> (i32, i32) {
    %c0_i32 = arith.constant 0 : i32
    %c0_i32_0 = arith.constant 0 : i32
    %c0_i32_1 = arith.constant 0 : i32
    return %c0_i32, %c0_i32_0 : i32, i32
  }
  func.func @transform_5(%arg0: i32) -> (i32, i32, i32) {
    %c0_i32 = arith.constant 0 : i32
    %c0_i32_0 = arith.constant 0 : i32
    %c0_i32_1 = arith.constant 0 : i32
    return %arg0, %c0_i32, %c0_i32_0 : i32, i32, i32
  }
}

</mosaic_0001>

<llo_original>
// kernel: se_module_apply.1
$region0: #{se_module_apply.1}
  #allocation0 [shape = 'u32[]', space=smem, size = 0x4, offset = 0x4, fixed_abs, tag = 'smem constant byte address 0x4 - core index']
  #allocation1 [shape = 'u32[72,128]{1,0:T(1,128)}', space=vmem, size = 0x9000, scoped, tag = 'internal scratch']
  %s0 = inlined_call_operand.vmem [shape: f32[2,64,256], index: 0, kind: input, shape index: {}]
  %s1 = inlined_call_operand.vmem [shape: f32[64,16], index: 1, kind: input, shape index: {}]
  %s2 = inlined_call_operand.vmem [shape: f32[1,16], index: 2, kind: input, shape index: {}]
  %s3 = inlined_call_operand.vmem [shape: f32[16,64], index: 3, kind: input, shape index: {}]
  %s4 = inlined_call_operand.vmem [shape: f32[1,64], index: 4, kind: input, shape index: {}]
  %s5 = inlined_call_operand.vmem [shape: f32[2,64,256], index: 5, kind: output, shape index: {}]
  %s6 = sld [smem:[#allocation0]]
  $region53: #{se_module_apply.1} parent=0
    _
  %s8 = ssub.s32 1, %s6
  %s9 = scalar_select 0, %s8, %s6
  loop: start=0, step=1, limit=4
  $region2: #{se_module_apply.1} parent=0 // loop_pre_header
    _
  $region3: #{se_module_apply.1} parent=0 // loop_header
    %s11 = sphi 0, %s15
    %p12 = scmp.ge.s32.totalorder %s11, 4
    %s21 = sphi 0, %s23
    %s24 = sphi 0, %s21
    %s25 = sphi 0, %s24
    %s41 = sphi 0, %s25
    %s45 = sphi 0, %s45
    %s47 = sphi 0, %s45
    %s48 = sphi 0, %s47
    %s62 = sphi 0, %s48
    %s66 = sphi 0, %s66
    %s68 = sphi 0, %s66
    %s69 = sphi 0, %s68
    %s83 = sphi 0, %s69
    %s87 = sphi 0, %s87
    %s89 = sphi 0, %s87
    %s90 = sphi 0, %s89
    %s104 = sphi 0, %s90
    %s108 = sphi 0, %s108
    %s110 = sphi 0, %s108
    %s111 = sphi 0, %s110
    %s125 = sphi 0, %s111
    %s131 = sphi 0, %s133
    %s134 = sphi 0, %s131
    %s135 = sphi 0, %s134
    %s151 = sphi 0, %s135
  $region4: #{se_module_apply.1} parent=0 // loop_header_branch
    %14 = sbr.rel (%p12) target = $region8
  $region5: #{se_module_apply.1} parent=0 // loop_body
    %s16 = ssub.s32 %s11, 1
    %s17 = ssub.s32 %s11, 2
    %s18 = sadd.s32 %s11, 1
    %s19 = ssub.s32 %s11, %s18
    %p20 = scmp.eq.s32.totalorder %s19, 0
    %s22 = sadd.s32 %s21, 1
    %s23 = scalar_select %p20, %s21, %s22
    %p26 = pneg %p20
    %p27 = scmp.eq.s32.totalorder %s11, 1
    %p28 = por %p26, %p27
    %p29 = scmp.ne.s32.totalorder %s21, %s24
    %p30 = scmp.eq.s32.totalorder %s11, 0
    %p31 = por %p29, %p30
    %p32 = scmp.ne.s32.totalorder %s21, %s24
    %p33 = scmp.eq.s32.totalorder %s16, 1
    %p34 = por %p32, %p33
    %p35 = scmp.ne.s32.totalorder %s24, %s25
    %p36 = scmp.eq.s32.totalorder %s16, 0
    %p37 = por %p35, %p36
    %p38 = scmp.ne.s32.totalorder %s24, %s25
    %p39 = scmp.eq.s32.totalorder %s17, 1
    %p40 = por %p38, %p39
    %p42 = scmp.ne.s32.totalorder %s25, %s41
    %p43 = scmp.eq.s32.totalorder %s17, 0
    %p44 = por %p42, %p43
    %s46 = sadd.s32 %s45, 1
    %p49 = scmp.eq.s32.totalorder %s11, 1
    %p50 = scmp.ne.s32.totalorder %s45, %s47
    %p51 = scmp.eq.s32.totalorder %s11, 0
    %p52 = por %p50, %p51
    %p53 = scmp.ne.s32.totalorder %s45, %s47
    %p54 = scmp.eq.s32.totalorder %s16, 1
    %p55 = por %p53, %p54
    %p56 = scmp.ne.s32.totalorder %s47, %s48
    %p57 = scmp.eq.s32.totalorder %s16, 0
    %p58 = por %p56, %p57
    %p59 = scmp.ne.s32.totalorder %s47, %s48
    %p60 = scmp.eq.s32.totalorder %s17, 1
    %p61 = por %p59, %p60
    %p63 = scmp.ne.s32.totalorder %s48, %s62
    %p64 = scmp.eq.s32.totalorder %s17, 0
    %p65 = por %p63, %p64
    %s67 = sadd.s32 %s66, 1
    %p70 = scmp.eq.s32.totalorder %s11, 1
    %p71 = scmp.ne.s32.totalorder %s66, %s68
    %p72 = scmp.eq.s32.totalorder %s11, 0
    %p73 = por %p71, %p72
    %p74 = scmp.ne.s32.totalorder %s66, %s68
    %p75 = scmp.eq.s32.totalorder %s16, 1
    %p76 = por %p74, %p75
    %p77 = scmp.ne.s32.totalorder %s68, %s69
    %p78 = scmp.eq.s32.totalorder %s16, 0
    %p79 = por %p77, %p78
    %p80 = scmp.ne.s32.totalorder %s68, %s69
    %p81 = scmp.eq.s32.totalorder %s17, 1
    %p82 = por %p80, %p81
    %p84 = scmp.ne.s32.totalorder %s69, %s83
    %p85 = scmp.eq.s32.totalorder %s17, 0
    %p86 = por %p84, %p85
    %s88 = sadd.s32 %s87, 1
    %p91 = scmp.eq.s32.totalorder %s11, 1
    %p92 = scmp.ne.s32.totalorder %s87, %s89
    %p93 = scmp.eq.s32.totalorder %s11, 0
    %p94 = por %p92, %p93
    %p95 = scmp.ne.s32.totalorder %s87, %s89
    %p96 = scmp.eq.s32.totalorder %s16, 1
    %p97 = por %p95, %p96
    %p98 = scmp.ne.s32.totalorder %s89, %s90
    %p99 = scmp.eq.s32.totalorder %s16, 0
    %p100 = por %p98, %p99
    %p101 = scmp.ne.s32.totalorder %s89, %s90
    %p102 = scmp.eq.s32.totalorder %s17, 1
    %p103 = por %p101, %p102
    %p105 = scmp.ne.s32.totalorder %s90, %s104
    %p106 = scmp.eq.s32.totalorder %s17, 0
    %p107 = por %p105, %p106
    %s109 = sadd.s32 %s108, 1
    %p112 = scmp.eq.s32.totalorder %s11, 1
    %p113 = scmp.ne.s32.totalorder %s108, %s110
    %p114 = scmp.eq.s32.totalorder %s11, 0
    %p115 = por %p113, %p114
    %p116 = scmp.ne.s32.totalorder %s108, %s110
    %p117 = scmp.eq.s32.totalorder %s16, 1
    %p118 = por %p116, %p117
    %p119 = scmp.ne.s32.totalorder %s110, %s111
    %p120 = scmp.eq.s32.totalorder %s16, 0
    %p121 = por %p119, %p120
    %p122 = scmp.ne.s32.totalorder %s110, %s111
    %p123 = scmp.eq.s32.totalorder %s17, 1
    %p124 = por %p122, %p123
    %p126 = scmp.ne.s32.totalorder %s111, %s125
    %p127 = scmp.eq.s32.totalorder %s17, 0
    %p128 = por %p126, %p127
    %s129 = ssub.s32 %s11, %s18
    %p130 = scmp.eq.s32.totalorder %s129, 0
    %s132 = sadd.s32 %s131, 1
    %s133 = scalar_select %p130, %s131, %s132
    %p136 = pneg %p130
    %p137 = scmp.eq.s32.totalorder %s11, 1
    %p138 = por %p136, %p137
    %p139 = scmp.ne.s32.totalorder %s131, %s134
    %p140 = scmp.eq.s32.totalorder %s11, 0
    %p141 = por %p139, %p140
    %p142 = scmp.ne.s32.totalorder %s131, %s134
    %p143 = scmp.eq.s32.totalorder %s16, 1
    %p144 = por %p142, %p143
    %p145 = scmp.ne.s32.totalorder %s134, %s135
    %p146 = scmp.eq.s32.totalorder %s16, 0
    %p147 = por %p145, %p146
    %p148 = scmp.ne.s32.totalorder %s134, %s135
    %p149 = scmp.eq.s32.totalorder %s17, 1
    %p150 = por %p148, %p149
    %p152 = scmp.ne.s32.totalorder %s135, %s151
    %p153 = scmp.eq.s32.totalorder %s17, 0
    %p154 = por %p152, %p153
    %p155 = scmp.le.s32.totalorder 1, %s11
    %p156 = scmp.lt.s32.totalorder %s11, 3
    %p157 = pnand %p155, %p156
    %p158 = pneg %p157
    // Predicated region
    $region9: #{se_module_apply.1} parent=5 // pred_check
      _
    $region10: #{se_module_apply.1} parent=5 // pred_check_branch
      %160 = sbr.rel (%p157) target = $region12
    $region11: #{se_module_apply.1} parent=5 // pred_region
      %s161 = ssub.s32 %s11, 1
      // Predicated region
      $region13: #{se_module_apply.1} parent=11 // pred_check
        %p162 = pneg %p58
      $region14: #{se_module_apply.1} parent=11 // pred_check_branch
        %164 = sbr.rel (%p162) target = $region16
      $region15: #{se_module_apply.1} parent=11 // pred_region
        _
      $region16: #{se_module_apply.1} parent=11 // pred_fallthru
        _
      // Predicated region
      $region17: #{se_module_apply.1} parent=11 // pred_check
        %p165 = pneg %p79
      $region18: #{se_module_apply.1} parent=11 // pred_check_branch
        %167 = sbr.rel (%p165) target = $region20
      $region19: #{se_module_apply.1} parent=11 // pred_region
        _
      $region20: #{se_module_apply.1} parent=11 // pred_fallthru
        _
      // Predicated region
      $region21: #{se_module_apply.1} parent=11 // pred_check
        %p168 = pneg %p100
      $region22: #{se_module_apply.1} parent=11 // pred_check_branch
        %170 = sbr.rel (%p168) target = $region24
      $region23: #{se_module_apply.1} parent=11 // pred_region
        _
      $region24: #{se_module_apply.1} parent=11 // pred_fallthru
        _
      // Predicated region
      $region25: #{se_module_apply.1} parent=11 // pred_check
        %p171 = pneg %p121
      $region26: #{se_module_apply.1} parent=11 // pred_check_branch
        %173 = sbr.rel (%p171) target = $region28
      $region27: #{se_module_apply.1} parent=11 // pred_region
        _
      $region28: #{se_module_apply.1} parent=11 // pred_fallthru
        _
    $region12: #{se_module_apply.1} parent=5 // pred_fallthru
      _
    %p174 = scmp.lt.s32.totalorder %s11, 2
    // Predicated region
    $region29: #{se_module_apply.1} parent=5 // pred_check
      %p175 = pneg %p174
    $region30: #{se_module_apply.1} parent=5 // pred_check_branch
      %177 = sbr.rel (%p175) target = $region32
    $region31: #{se_module_apply.1} parent=5 // pred_region
      // Predicated region
      $region33: #{se_module_apply.1} parent=31 // pred_check
        %p178 = pneg %p31
      $region34: #{se_module_apply.1} parent=31 // pred_check_branch
        %180 = sbr.rel (%p178) target = $region36
      $region35: #{se_module_apply.1} parent=31 // pred_region
        %p181 = scmp.lt.s32.totalorder %s11, 1
        %s182 = scalar_select %p181, %s11, 1
        %s183 = smul.addr %s182, 16
        %s184 = smul.addr %s183, 8
        %s185 = scalar_lea.vmem %s0, %s184
      $region36: #{se_module_apply.1} parent=31 // pred_fallthru
        _
    $region32: #{se_module_apply.1} parent=5 // pred_fallthru
      _
    %p186 = scmp.le.s32.totalorder 1, %s11
    %p187 = scmp.lt.s32.totalorder %s11, 3
    %p188 = pnand %p186, %p187
    %p189 = pneg %p188
    // Predicated region
    $region37: #{se_module_apply.1} parent=5 // pred_check
      _
    $region38: #{se_module_apply.1} parent=5 // pred_check_branch
      %191 = sbr.rel (%p188) target = $region40
    $region39: #{se_module_apply.1} parent=5 // pred_region
      %s192 = ssub.s32 %s11, 1
      %p193 = scmp.lt.s32.totalorder %s16, 1
      %s194 = scalar_select %p193, %s16, 1
      %s195 = smul.addr %s194, 16
      %s196 = smul.addr %s195, 8
      %s197 = scalar_lea.vmem %s0, %s196
      %p198 = pneg %p37
      %p199 = pneg %p34
      %p200 = pneg %p58
      %p201 = pneg %p55
      %p202 = pneg %p79
      %p203 = pneg %p76
      %p204 = pneg %p100
      %p205 = pneg %p97
      %p206 = pneg %p121
      %p207 = pneg %p118
      %p208 = pneg %p147
      %p209 = pneg %p144
      %p210 = scmp.lt.s32.totalorder %s16, 1
      %s211 = scalar_select %p210, %s16, 1
      %s212 = smul.addr %s211, 16
      %s213 = smul.addr %s212, 8
      %s214 = scalar_lea.vmem %s5, %s213
      %p215 = scmp.lt.s32.totalorder %s16, 1
      %s216 = scalar_select %p215, %s16, 1
      %s217 = smul.addr %s216, 16
      %s218 = smul.addr %s217, 8
      %s219 = scalar_lea.vmem %s0, %s218
      %p220 = scmp.lt.s32.totalorder %s16, 1
      %s221 = scalar_select %p220, %s16, 1
      %s222 = smul.addr %s221, 16
      %s223 = smul.addr %s222, 8
      %s224 = scalar_lea.vmem %s5, %s223
      %v225 = vld [vmem:[%s219] sm:$0xff]
      %v226 = vld [vmem:[%s219 + $0x8] sm:$0xff]
      %v227 = vld [vmem:[%s219 + $0x10] sm:$0xff]
      %v228 = vld [vmem:[%s219 + $0x18] sm:$0xff]
      %v229 = vld [vmem:[%s219 + $0x20] sm:$0xff]
      %v230 = vld [vmem:[%s219 + $0x28] sm:$0xff]
      %v231 = vld [vmem:[%s219 + $0x30] sm:$0xff]
      %v232 = vld [vmem:[%s219 + $0x38] sm:$0xff]
      %v233 = vld [vmem:[%s219 + $0x40] sm:$0xff]
      %v234 = vld [vmem:[%s219 + $0x48] sm:$0xff]
      %v235 = vld [vmem:[%s219 + $0x50] sm:$0xff]
      %v236 = vld [vmem:[%s219 + $0x58] sm:$0xff]
      %v237 = vld [vmem:[%s219 + $0x60] sm:$0xff]
      %v238 = vld [vmem:[%s219 + $0x68] sm:$0xff]
      %v239 = vld [vmem:[%s219 + $0x70] sm:$0xff]
      %v240 = vld [vmem:[%s219 + $0x78] sm:$0xff]
      %v241 = vadd.f32 %v225, %v226
      %242 = vadd.xlane.f32.xlu0 %v241
      %v243 = vpop.xlane.xlu0 %242
      %v244 = vadd.f32 %v227, %v228
      %245 = vadd.xlane.f32.xlu0 %v244
      %v246 = vpop.xlane.xlu0 %245
      %v247 = vadd.f32 %v229, %v230
      %248 = vadd.xlane.f32.xlu0 %v247
      %v249 = vpop.xlane.xlu0 %248
      %v250 = vadd.f32 %v231, %v232
      %251 = vadd.xlane.f32.xlu0 %v250
      %v252 = vpop.xlane.xlu0 %251
      %v253 = vadd.f32 %v233, %v234
      %254 = vadd.xlane.f32.xlu0 %v253
      %v255 = vpop.xlane.xlu0 %254
      %v256 = vadd.f32 %v235, %v236
      %257 = vadd.xlane.f32.xlu0 %v256
      %v258 = vpop.xlane.xlu0 %257
      %v259 = vadd.f32 %v237, %v238
      %260 = vadd.xlane.f32.xlu0 %v259
      %v261 = vpop.xlane.xlu0 %260
      %v262 = vadd.f32 %v239, %v240
      %263 = vadd.xlane.f32.xlu0 %v262
      %v264 = vpop.xlane.xlu0 %263
      %v265 = vld [vmem:[%s1] sm:$0xff]
      %v266 = vld [vmem:[%s1 + $0x8] sm:$0xff]
      %v267 = vld [vmem:[%s1 + $0x10] sm:$0xff]
      %v268 = vld [vmem:[%s1 + $0x18] sm:$0xff]
      %v269 = vld [vmem:[%s1 + $0x20] sm:$0xff]
      %v270 = vld [vmem:[%s1 + $0x28] sm:$0xff]
      %v271 = vld [vmem:[%s1 + $0x30] sm:$0xff]
      %v272 = vld [vmem:[%s1 + $0x38] sm:$0xff]
      %v273 = vld [vmem:[%s2] sm:$0x1]
      %v282 = vlaneseq
      %v283 = vand.u32 %v282, 127
      %v284 = vperm.slane %v243, %v283
      %v285 = vadd.s32 %v283, 4294967288
      %v286 = vperm.slane %v246, %v285
      %vm287 = vcmask 130112
      %v288 = vsel %vm287, %v286, %v284
      %v289 = vadd.s32 %v283, 4294967280
      %v290 = vperm.slane %v249, %v289
      %vm291 = vcmask 195712
      %v292 = vsel %vm291, %v290, %v288
      %v293 = vadd.s32 %v283, 4294967272
      %v294 = vperm.slane %v252, %v293
      %vm295 = vcmask 261312
      %v296 = vsel %vm295, %v294, %v292
      %v297 = vadd.s32 %v283, 4294967264
      %v298 = vperm.slane %v255, %v297
      %vm299 = vcmask 326912
      %v300 = vsel %vm299, %v298, %v296
      %v301 = vadd.s32 %v283, 4294967256
      %v302 = vperm.slane %v258, %v301
      %vm303 = vcmask 392512
      %v304 = vsel %vm303, %v302, %v300
      %v305 = vadd.s32 %v283, 4294967248
      %v306 = vperm.slane %v261, %v305
      %vm307 = vcmask 458112
      %v308 = vsel %vm307, %v306, %v304
      %v309 = vadd.s32 %v283, 4294967240
      %v310 = vperm.slane %v264, %v309
      %vm311 = vcmask 523712
      %v312 = vsel %vm311, %v310, %v308
      %vm313 = vcmask 523264
      %v314 = vsel %vm313, %v312, 0
      %316 = vmatpush.msra.mxu0 0.0
      %317 = vmatpush.msra.mxu0 0.0
      %318 = vmatpush.msra.mxu0 0.0
      %319 = vmatpush.msra.mxu0 0.0
      %320 = vmatpush.msra.mxu0 0.0
      %321 = vmatpush.msra.mxu0 0.0
      %322 = vmatpush.msra.mxu0 0.0
      %323 = vmatpush.msra.mxu0 0.0
      %324 = vmatpush.msra.mxu0 %v272
      %325 = vmatpush.msra.mxu0 %v271
      %326 = vmatpush.msra.mxu0 %v270
      %327 = vmatpush.msra.mxu0 %v269
      %328 = vmatpush.msra.mxu0 %v268
      %329 = vmatpush.msra.mxu0 %v267
      %330 = vmatpush.msra.mxu0 %v266
      %331 = vmatpush.msra.mxu0 %v265
      %332 = vmatmul.f32.gmra.mxu0 %v314
      %v333 = vpop.f32.mrf.mxu0
      %v334 = vadd.f32 %v273, %v333
      %335 = vdwg.mxu0
      %v336 = vmax.f32 %v334, 0.0
      %v337 = vld [vmem:[%s3] sm:$0xff]
      %v338 = vld [vmem:[%s3 + $0x8] sm:$0xff]
      %v339 = vld [vmem:[%s4] sm:$0x1]
      %vm340 = vcmask 130048
      %v342 = vsel %vm340, %v336, 0
      %344 = vmatpush.msra.mxu0 0.0
      %345 = vmatpush.msra.mxu0 0.0
      %346 = vmatpush.msra.mxu0 0.0
      %347 = vmatpush.msra.mxu0 0.0
      %348 = vmatpush.msra.mxu0 0.0
      %349 = vmatpush.msra.mxu0 0.0
      %350 = vmatpush.msra.mxu0 0.0
      %351 = vmatpush.msra.mxu0 0.0
      %352 = vmatpush.msra.mxu0 0.0
      %353 = vmatpush.msra.mxu0 0.0
      %354 = vmatpush.msra.mxu0 0.0
      %355 = vmatpush.msra.mxu0 0.0
      %356 = vmatpush.msra.mxu0 0.0
      %357 = vmatpush.msra.mxu0 0.0
      %358 = vmatpush.msra.mxu0 %v338
      %359 = vmatpush.msra.mxu0 %v337
      %360 = vmatmul.f32.gmra.mxu0 %v342
      %v361 = vpop.f32.mrf.mxu0
      %v362 = vadd.f32 %v339, %v361
      %363 = vdwg.mxu0
      %v364 = vadd.f32 %v362, 3.0
      %v365 = vmax.f32 %v364, 0.0
      %v366 = vmin.f32 %v365, 6.0
      %v367 = vmul.f32 %v366, 0.16666667
      %v368 = vperm.slane %v367, 0
      %v369 = vlaneseq
      %v370 = vshrl.u32 %v369, 7
      %372 = vset.pattern.permute.xlu0 %v370
      %373 = vperm.xlu0 %372, %v368
      %v374 = vpop.permute.xlu0 %373
      %v375 = vlaneseq
      %v376 = vshrl.u32 %v375, 7
      %v377 = vadd.s32 %v376, 8
      %378 = vset.pattern.permute.xlu0 %v377
      %379 = vperm.xlu0 %378, %v368
      %v380 = vpop.permute.xlu0 %379
      %v381 = vlaneseq
      %v382 = vshrl.u32 %v381, 7
      %v383 = vadd.s32 %v382, 16
      %384 = vset.pattern.permute.xlu0 %v383
      %385 = vperm.xlu0 %384, %v368
      %v386 = vpop.permute.xlu0 %385
      %v387 = vlaneseq
      %v388 = vshrl.u32 %v387, 7
      %v389 = vadd.s32 %v388, 24
      %390 = vset.pattern.permute.xlu0 %v389
      %391 = vperm.xlu0 %390, %v368
      %v392 = vpop.permute.xlu0 %391
      %v393 = vlaneseq
      %v394 = vshrl.u32 %v393, 7
      %v395 = vadd.s32 %v394, 32
      %396 = vset.pattern.permute.xlu0 %v395
      %397 = vperm.xlu0 %396, %v368
      %v398 = vpop.permute.xlu0 %397
      %v399 = vlaneseq
      %v400 = vshrl.u32 %v399, 7
      %v401 = vadd.s32 %v400, 40
      %402 = vset.pattern.permute.xlu0 %v401
      %403 = vperm.xlu0 %402, %v368
      %v404 = vpop.permute.xlu0 %403
      %v405 = vlaneseq
      %v406 = vshrl.u32 %v405, 7
      %v407 = vadd.s32 %v406, 48
      %408 = vset.pattern.permute.xlu0 %v407
      %409 = vperm.xlu0 %408, %v368
      %v410 = vpop.permute.xlu0 %409
      %v411 = vlaneseq
      %v412 = vshrl.u32 %v411, 7
      %v413 = vadd.s32 %v412, 56
      %414 = vset.pattern.permute.xlu0 %v413
      %415 = vperm.xlu0 %414, %v368
      %v416 = vpop.permute.xlu0 %415
      %v417 = vmul.f32 %v225, %v374
      %v418 = vmul.f32 %v226, %v374
      %v419 = vmul.f32 %v227, %v380
      %v420 = vmul.f32 %v228, %v380
      %v421 = vmul.f32 %v229, %v386
      %v422 = vmul.f32 %v230, %v386
      %v423 = vmul.f32 %v231, %v392
      %v424 = vmul.f32 %v232, %v392
      %v425 = vmul.f32 %v233, %v398
      %v426 = vmul.f32 %v234, %v398
      %v427 = vmul.f32 %v235, %v404
      %v428 = vmul.f32 %v236, %v404
      %v429 = vmul.f32 %v237, %v410
      %v430 = vmul.f32 %v238, %v410
      %v431 = vmul.f32 %v239, %v416
      %v432 = vmul.f32 %v240, %v416
      %433 = vst [vmem:[%s224] sm:$0xff] %v417
      %434 = vst [vmem:[%s224 + $0x8] sm:$0xff] %v418
      %435 = vst [vmem:[%s224 + $0x10] sm:$0xff] %v419
      %436 = vst [vmem:[%s224 + $0x18] sm:$0xff] %v420
      %437 = vst [vmem:[%s224 + $0x20] sm:$0xff] %v421
      %438 = vst [vmem:[%s224 + $0x28] sm:$0xff] %v422
      %439 = vst [vmem:[%s224 + $0x30] sm:$0xff] %v423
      %440 = vst [vmem:[%s224 + $0x38] sm:$0xff] %v424
      %441 = vst [vmem:[%s224 + $0x40] sm:$0xff] %v425
      %442 = vst [vmem:[%s224 + $0x48] sm:$0xff] %v426
      %443 = vst [vmem:[%s224 + $0x50] sm:$0xff] %v427
      %444 = vst [vmem:[%s224 + $0x58] sm:$0xff] %v428
      %445 = vst [vmem:[%s224 + $0x60] sm:$0xff] %v429
      %446 = vst [vmem:[%s224 + $0x68] sm:$0xff] %v430
      %447 = vst [vmem:[%s224 + $0x70] sm:$0xff] %v431
      %448 = vst [vmem:[%s224 + $0x78] sm:$0xff] %v432
      %p449 = scmp.lt.s32.totalorder %s16, 1
      %s450 = scalar_select %p449, %s16, 1
      %s451 = smul.addr %s450, 16
      %s452 = smul.addr %s451, 8
      %s453 = scalar_lea.vmem %s5, %s452
      // Predicated region
      $region41: #{se_module_apply.1} parent=39 // pred_check
        %p454 = pneg %p144
      $region42: #{se_module_apply.1} parent=39 // pred_check_branch
        %456 = sbr.rel (%p454) target = $region44
      $region43: #{se_module_apply.1} parent=39 // pred_region
        _
      $region44: #{se_module_apply.1} parent=39 // pred_fallthru
        _
    $region40: #{se_module_apply.1} parent=5 // pred_fallthru
      _
    %p457 = scmp.le.s32.totalorder 2, %s11
    // Predicated region
    $region45: #{se_module_apply.1} parent=5 // pred_check
      %p458 = pneg %p457
    $region46: #{se_module_apply.1} parent=5 // pred_check_branch
      %460 = sbr.rel (%p458) target = $region48
    $region47: #{se_module_apply.1} parent=5 // pred_region
      %s461 = ssub.s32 %s11, 2
      // Predicated region
      $region49: #{se_module_apply.1} parent=47 // pred_check
        %p462 = pneg %p150
      $region50: #{se_module_apply.1} parent=47 // pred_check_branch
        %464 = sbr.rel (%p462) target = $region52
      $region51: #{se_module_apply.1} parent=47 // pred_region
        %p465 = scmp.lt.s32.totalorder %s17, 1
        %s466 = scalar_select %p465, %s17, 1
        %s467 = smul.addr %s466, 16
        %s468 = smul.addr %s467, 8
        %s469 = scalar_lea.vmem %s5, %s468
      $region52: #{se_module_apply.1} parent=47 // pred_fallthru
        _
    $region48: #{se_module_apply.1} parent=5 // pred_fallthru
      _
  $region6: #{se_module_apply.1} parent=0 // loop_footer
    %s15 = sadd.s32 1, %s11
  $region7: #{se_module_apply.1} parent=0 // loop_footer_branch
    %10 = sbr.rel target = $region3
  $region8: #{se_module_apply.1} parent=0 // loop_exit
    _

</llo_original>
